<compile_context>
chip_gen: v5e
topology: v5e:2x2
jax: 0.10.0
libtpu: 0.0.40
codegen_flags: <defaults>
</compile_context>

<pallas_src>
import jax
import jax.numpy as jnp
from jax import lax
from jax.experimental import pallas as pl
from jax.experimental.pallas import tpu as pltpu

EPS = 1e-5
D_IN, D_HID, D_OUT = 3, 4, 5
SLAB_W = 8  # slab lane width (last dim pads to 128 in VMEM anyway)


def mlp_bn_kernel(x_ref, w_ref, o_ref):
    """x_ref: (B, D_IN); w_ref: packed weight slab (8*B, SLAB_W); o_ref: (B, D_OUT).

    Slab row layout (each logical row pre-replicated B times across sublanes):
      rows [k*B, (k+1)*B)                     k in [0, D_IN)   : w1 row k,  cols [0, D_HID)
      rows [(D_IN+k)*B, (D_IN+k+1)*B)         k in [0, D_HID)  : w2f row k, cols [0, D_OUT)
      rows [(D_IN+D_HID)*B, (D_IN+D_HID+1)*B)                  : folded bias, cols [0, D_OUT)
    """
    B = x_ref.shape[0]
    x = x_ref[...]                                              # (B, D_IN)

    # --- linear1 (bias dropped: cancelled by BN mean subtraction) ---
    # Each w1 row arrives already broadcast across B sublanes from the slab.
    h = x[:, 0:1] * w_ref[0:B, 0:D_HID]
    for k in range(1, D_IN):
        h = h + x[:, k:k + 1] * w_ref[k * B:(k + 1) * B, 0:D_HID]

    # --- batchnorm1d (training semantics: batch mean / biased variance) ---
    mean = jnp.mean(h, axis=0, keepdims=True)                   # (1, D_HID)
    centered = h - mean
    var = jnp.mean(centered * centered, axis=0, keepdims=True)
    h_norm = centered * lax.rsqrt(var + EPS)                    # (B, D_HID)

    # --- linear2 with gamma/beta/b2 pre-folded; bias row initializes acc ---
    base = D_IN * B
    acc = w_ref[base + D_HID * B: base + (D_HID + 1) * B, 0:D_OUT]   # folded bias (B, D_OUT)
    for k in range(D_HID):
        acc = acc + h_norm[:, k:k + 1] * w_ref[base + k * B: base + (k + 1) * B, 0:D_OUT]
    o_ref[...] = acc.astype(o_ref.dtype)


def fold_and_pack_params(w1, b1, gamma, beta, w2, b2, batch):
    """Fold BN affine + second bias into linear2 and pack all weight-side
    operands into one slab.  Call ONCE (hoisted out of the per-call hot path);
    with static weights this constant-folds to a literal."""
    del b1  # cancelled by batch-norm mean subtraction (training-mode stats)
    gamma = jnp.reshape(gamma, (-1,))
    beta = jnp.reshape(beta, (-1,))
    b2 = jnp.reshape(b2, (-1,))

    w2f = gamma[:, None] * w2                      # (D_HID, D_OUT)
    b2f = (beta @ w2 + b2)[None, :]                # (1, D_OUT)

    def pad_cols(a):
        return jnp.pad(a, ((0, 0), (0, SLAB_W - a.shape[1])))

    # Pre-replicate every logical row across the B sublanes so the kernel's
    # loads arrive already broadcast (no in-kernel sublane broadcast).
    w1_rep = jnp.repeat(pad_cols(w1), batch, axis=0)    # (D_IN*B,  SLAB_W)
    w2f_rep = jnp.repeat(pad_cols(w2f), batch, axis=0)  # (D_HID*B, SLAB_W)
    b2f_rep = jnp.repeat(pad_cols(b2f), batch, axis=0)  # (B,       SLAB_W)
    return jnp.concatenate([w1_rep, w2f_rep, b2f_rep], axis=0).astype(jnp.float32)


def model_forward(x, wslab):
    B = x.shape[0]
    full = lambda shape: pl.BlockSpec(shape, lambda: tuple(0 for _ in shape))

    flops = 2 * B * D_IN * D_HID + 2 * B * D_HID * D_OUT + 8 * B * D_HID
    bytes_accessed = 4 * (x.size + wslab.size + B * D_OUT)

    return pl.pallas_call(
        mlp_bn_kernel,
        out_shape=jax.ShapeDtypeStruct((B, D_OUT), jnp.float32),
        grid_spec=pltpu.PrefetchScalarGridSpec(
            num_scalar_prefetch=0,
            grid=(),
            in_specs=[
                full(x.shape),      # x     (B, D_IN)
                full(wslab.shape),  # slab  (8*B, SLAB_W)
            ],
            out_specs=full((B, D_OUT)),
        ),
        cost_estimate=pl.CostEstimate(
            flops=flops, transcendentals=D_HID, bytes_accessed=bytes_accessed),
    )(x, wslab)


def reference_forward(x, w1, b1, gamma, beta, w2, b2):
    h = x @ w1 + b1
    mean = jnp.mean(h, axis=0, keepdims=True)
    var = jnp.mean((h - mean) ** 2, axis=0, keepdims=True)
    h_bn = (h - mean) / jnp.sqrt(var + EPS) * gamma + beta
    return h_bn @ w2 + b2


if __name__ == "__main__":
    key = jax.random.PRNGKey(0)
    kx, k1, kb1, k2, kb2 = jax.random.split(key, 5)

    B = 8
    x = jax.random.normal(kx, (B, D_IN), dtype=jnp.float32)

    # PyTorch-style uniform init; weights stored as (in, out), i.e. already
    # transposed relative to torch.nn.Linear.
    bound1 = 1.0 / jnp.sqrt(D_IN)
    w1 = jax.random.uniform(k1, (D_IN, D_HID), minval=-bound1, maxval=bound1,
                            dtype=jnp.float32)
    b1 = jax.random.uniform(kb1, (D_HID,), minval=-bound1, maxval=bound1,
                            dtype=jnp.float32)

    gamma = jnp.ones((D_HID,), dtype=jnp.float32)   # BatchNorm1d weight init
    beta = jnp.zeros((D_HID,), dtype=jnp.float32)   # BatchNorm1d bias init

    bound2 = 1.0 / jnp.sqrt(D_HID)
    w2 = jax.random.uniform(k2, (D_HID, D_OUT), minval=-bound2, maxval=bound2,
                            dtype=jnp.float32)
    b2 = jax.random.uniform(kb2, (D_OUT,), minval=-bound2, maxval=bound2,
                            dtype=jnp.float32)

    # Fold + pack weights ONCE (hoisted out of the per-call path).
    wslab = fold_and_pack_params(w1, b1, gamma, beta, w2, b2, B)
    wslab = jax.block_until_ready(wslab)

    out = model_forward(x, wslab)
    out = jax.block_until_ready(out)

    ref = reference_forward(x, w1, b1, gamma, beta, w2, b2)
    assert out.shape == (B, D_OUT)
    assert jnp.allclose(out, ref, atol=1e-5, rtol=1e-5), "mismatch vs reference"

    print("KERNEL_OK")
</pallas_src>

<mosaic_0001>
module attributes {stable_mosaic.version = 11 : i64} {
  func.func @mlp_bn_kernel(%arg0: memref<8x3xf32, #tpu.memory_space<vmem>>, %arg1: memref<64x8xf32, #tpu.memory_space<vmem>>, %arg2: memref<8x5xf32, #tpu.memory_space<vmem>>) attributes {dimension_semantics = [], scalar_prefetch = 0 : i64, scratch_operands = 0 : i64, tpu.core_type = #tpu.core_type<tc>} {
    %c0 = arith.constant 0 : index
    %c0_0 = arith.constant 0 : index
    %0 = vector.load %arg0[%c0, %c0_0] : memref<8x3xf32, #tpu.memory_space<vmem>>, vector<8x3xf32>
    %1 = vector.extract_strided_slice %0 {offsets = [0, 0], sizes = [8, 1], strides = [1, 1]} : vector<8x3xf32> to vector<8x1xf32>
    %c0_1 = arith.constant 0 : index
    %c0_2 = arith.constant 0 : index
    %2 = vector.load %arg1[%c0_1, %c0_2] : memref<64x8xf32, #tpu.memory_space<vmem>>, vector<8x4xf32>
    %3 = vector.broadcast %1 : vector<8x1xf32> to vector<8x4xf32>
    %4 = arith.mulf %3, %2 : vector<8x4xf32>
    %5 = vector.extract_strided_slice %0 {offsets = [0, 1], sizes = [8, 1], strides = [1, 1]} : vector<8x3xf32> to vector<8x1xf32>
    %c8 = arith.constant 8 : index
    %c0_3 = arith.constant 0 : index
    %6 = vector.load %arg1[%c8, %c0_3] : memref<64x8xf32, #tpu.memory_space<vmem>>, vector<8x4xf32>
    %7 = vector.broadcast %5 : vector<8x1xf32> to vector<8x4xf32>
    %8 = arith.mulf %7, %6 : vector<8x4xf32>
    %9 = arith.addf %4, %8 : vector<8x4xf32>
    %10 = vector.extract_strided_slice %0 {offsets = [0, 2], sizes = [8, 1], strides = [1, 1]} : vector<8x3xf32> to vector<8x1xf32>
    %c16 = arith.constant 16 : index
    %c0_4 = arith.constant 0 : index
    %11 = vector.load %arg1[%c16, %c0_4] : memref<64x8xf32, #tpu.memory_space<vmem>>, vector<8x4xf32>
    %12 = vector.broadcast %10 : vector<8x1xf32> to vector<8x4xf32>
    %13 = arith.mulf %12, %11 : vector<8x4xf32>
    %14 = arith.addf %9, %13 : vector<8x4xf32>
    %cst = arith.constant dense<0.000000e+00> : vector<4xf32>
    %15 = vector.multi_reduction <add>, %14, %cst [0] : vector<8x4xf32> to vector<4xf32>
    %16 = vector.shape_cast %15 : vector<4xf32> to vector<1x4xf32>
    %cst_5 = arith.constant 8.000000e+00 : f32
    %17 = vector.broadcast %cst_5 : f32 to vector<1x4xf32>
    %18 = arith.divf %16, %17 : vector<1x4xf32>
    %19 = vector.broadcast %18 : vector<1x4xf32> to vector<8x4xf32>
    %20 = arith.subf %14, %19 : vector<8x4xf32>
    %21 = arith.mulf %20, %20 : vector<8x4xf32>
    %cst_6 = arith.constant dense<0.000000e+00> : vector<4xf32>
    %22 = vector.multi_reduction <add>, %21, %cst_6 [0] : vector<8x4xf32> to vector<4xf32>
    %23 = vector.shape_cast %22 : vector<4xf32> to vector<1x4xf32>
    %cst_7 = arith.constant 8.000000e+00 : f32
    %24 = vector.broadcast %cst_7 : f32 to vector<1x4xf32>
    %25 = arith.divf %23, %24 : vector<1x4xf32>
    %cst_8 = arith.constant 9.99999974E-6 : f32
    %26 = vector.broadcast %cst_8 : f32 to vector<1x4xf32>
    %27 = arith.addf %25, %26 : vector<1x4xf32>
    %28 = math.rsqrt %27 : vector<1x4xf32>
    %29 = vector.broadcast %28 : vector<1x4xf32> to vector<8x4xf32>
    %30 = arith.mulf %20, %29 : vector<8x4xf32>
    %c56 = arith.constant 56 : index
    %c0_9 = arith.constant 0 : index
    %31 = vector.load %arg1[%c56, %c0_9] : memref<64x8xf32, #tpu.memory_space<vmem>>, vector<8x5xf32>
    %32 = vector.extract_strided_slice %30 {offsets = [0, 0], sizes = [8, 1], strides = [1, 1]} : vector<8x4xf32> to vector<8x1xf32>
    %c24 = arith.constant 24 : index
    %c0_10 = arith.constant 0 : index
    %33 = vector.load %arg1[%c24, %c0_10] : memref<64x8xf32, #tpu.memory_space<vmem>>, vector<8x5xf32>
    %34 = vector.broadcast %32 : vector<8x1xf32> to vector<8x5xf32>
    %35 = arith.mulf %34, %33 : vector<8x5xf32>
    %36 = arith.addf %31, %35 : vector<8x5xf32>
    %37 = vector.extract_strided_slice %30 {offsets = [0, 1], sizes = [8, 1], strides = [1, 1]} : vector<8x4xf32> to vector<8x1xf32>
    %c32 = arith.constant 32 : index
    %c0_11 = arith.constant 0 : index
    %38 = vector.load %arg1[%c32, %c0_11] : memref<64x8xf32, #tpu.memory_space<vmem>>, vector<8x5xf32>
    %39 = vector.broadcast %37 : vector<8x1xf32> to vector<8x5xf32>
    %40 = arith.mulf %39, %38 : vector<8x5xf32>
    %41 = arith.addf %36, %40 : vector<8x5xf32>
    %42 = vector.extract_strided_slice %30 {offsets = [0, 2], sizes = [8, 1], strides = [1, 1]} : vector<8x4xf32> to vector<8x1xf32>
    %c40 = arith.constant 40 : index
    %c0_12 = arith.constant 0 : index
    %43 = vector.load %arg1[%c40, %c0_12] : memref<64x8xf32, #tpu.memory_space<vmem>>, vector<8x5xf32>
    %44 = vector.broadcast %42 : vector<8x1xf32> to vector<8x5xf32>
    %45 = arith.mulf %44, %43 : vector<8x5xf32>
    %46 = arith.addf %41, %45 : vector<8x5xf32>
    %47 = vector.extract_strided_slice %30 {offsets = [0, 3], sizes = [8, 1], strides = [1, 1]} : vector<8x4xf32> to vector<8x1xf32>
    %c48 = arith.constant 48 : index
    %c0_13 = arith.constant 0 : index
    %48 = vector.load %arg1[%c48, %c0_13] : memref<64x8xf32, #tpu.memory_space<vmem>>, vector<8x5xf32>
    %49 = vector.broadcast %47 : vector<8x1xf32> to vector<8x5xf32>
    %50 = arith.mulf %49, %48 : vector<8x5xf32>
    %51 = arith.addf %46, %50 : vector<8x5xf32>
    %c0_14 = arith.constant 0 : index
    %c0_15 = arith.constant 0 : index
    %52 = vector.load %arg2[%c0_14, %c0_15] : memref<8x5xf32, #tpu.memory_space<vmem>>, vector<8x5xf32>
    tpu.vector_store %arg2[%c0_14, %c0_15], %51 {strides = array<i32>} : memref<8x5xf32, #tpu.memory_space<vmem>>, vector<8x5xf32>,
    return
  }
}

</mosaic_0001>

<llo_original>
// kernel: tpu_custom_call.1
$region0: #{tpu_custom_call.1}
  #allocation0 [shape = 'u32[]', space=smem, size = 0x4, offset = 0x4, fixed_abs, tag = 'smem constant byte address 0x4 - core index']
  #allocation1 [shape = 'u32[72,128]{1,0:T(1,128)}', space=vmem, size = 0x9000, scoped, tag = 'internal scratch']
  %s0 = inlined_call_operand.vmem [shape: f32[8,3], index: 0, kind: input, shape index: {}]
  %s1 = inlined_call_operand.vmem [shape: f32[64,8], index: 1, kind: input, shape index: {}]
  %s2 = inlined_call_operand.hbm [shape: f32[8,5], index: 2, kind: output, shape index: {}]
  %s3 = sld [smem:[#allocation0]]
  $region18: #{tpu_custom_call.1} parent=0
    _
  %s5 = ssub.s32 1, %s3
  %s6 = scalar_select 0, %s5, %s3
  $region1: #{tpu_custom_call.1} parent=0
    #allocation2 [shape = 'u8[4096]{0}', space=vmem, size = 0x1000, scoped, tag = 'output window, operand 0, single buffered']
    #allocation3 [shape = 's32[1]{0}', space=sflag, size = 0x4, scoped, tag = 'scoped memory for tpu_custom_call.1']
    %7 = vsyncpa [#allocation3], 0
    // Predicated region
    $region2: #{tpu_custom_call.1} parent=1 // pred_check
      _
    $region3: #{tpu_custom_call.1} parent=1 // pred_check_branch
      %9 = sbr.rel (0) target = $region5
    $region4: #{tpu_custom_call.1} parent=1 // pred_region
      _
    $region5: #{tpu_custom_call.1} parent=1 // pred_fallthru
      _
    // Predicated region
    $region6: #{tpu_custom_call.1} parent=1 // pred_check
      _
    $region7: #{tpu_custom_call.1} parent=1 // pred_check_branch
      %11 = sbr.rel (0) target = $region9
    $region8: #{tpu_custom_call.1} parent=1 // pred_region
      _
    $region9: #{tpu_custom_call.1} parent=1 // pred_fallthru
      _
    %v12 = vld [vmem:[%s0] sm:$0xff]
    %v13 = vld [vmem:[%s1] sm:$0xff]
    %15 = vset.pattern.permute.xlu0 0
    %16 = vperm.xlu0 %15, %v12
    %v17 = vpop.permute.xlu0 %16
    %v19 = vmul.f32 %v17, %v13
    %v20 = vld [vmem:[%s1 + $0x8] sm:$0xff]
    %21 = vset.pattern.permute.xlu0 1
    %22 = vperm.xlu0 %21, %v12
    %v23 = vpop.permute.xlu0 %22
    %v25 = vmul.f32 %v23, %v20
    %v26 = vadd.f32 %v19, %v25
    %v27 = vld [vmem:[%s1 + $0x10] sm:$0xff]
    %28 = vset.pattern.permute.xlu0 2
    %29 = vperm.xlu0 %28, %v12
    %v30 = vpop.permute.xlu0 %29
    %v32 = vmul.f32 %v30, %v27
    %v33 = vadd.f32 %v26, %v32
    %vm34 = vcmask 31744
    %v35 = vsel %vm34, %v33, 0.0
    %v36 = vrot.slane %v35, 4
    %v37 = vadd.f32 %v35, %v36
    %v38 = vrot.slane %v37, 2
    %v39 = vadd.f32 %v37, %v38
    %v40 = vrot.slane %v39, 1
    %v41 = vadd.f32 %v39, %v40
    %v42 = vrcp.pop 8.0
    %v43 = vmul.f32 8.0, %v42
    %v44 = vsub.f32 1.0, %v43
    %v45 = vmul.f32 %v42, %v44
    %v46 = vadd.f32 %v42, %v45
    %vm47 = vweird.f32 %v42
    %v48 = vsel %vm47, %v42, %v46
    %v49 = vmul.f32 %v41, %v48
    %v50 = vsub.f32 %v33, %v49
    %v51 = vmul.f32 %v50, %v50
    %v52 = vsel %vm34, %v51, 0.0
    %v53 = vrot.slane %v52, 4
    %v54 = vadd.f32 %v52, %v53
    %v55 = vrot.slane %v54, 2
    %v56 = vadd.f32 %v54, %v55
    %v57 = vrot.slane %v56, 1
    %v58 = vadd.f32 %v56, %v57
    %v59 = vmul.f32 %v58, %v48
    %v60 = vadd.f32 %v59, 1e-05
    %v61 = vrsqrt.pop %v60
    %v62 = vmul.f32 %v61, %v60
    %v63 = vmul.f32 %v62, %v61
    %v64 = vmul.f32 0.5, %v63
    %v65 = vsub.f32 1.5, %v64
    %v66 = vmul.f32 %v61, %v65
    %vm67 = vweird.f32 %v60
    %vm68 = vweird.f32 %v61
    %vm69 = vmor %vm67, %vm68
    %v70 = vsel %vm69, %v61, %v66
    %v71 = vmul.f32 %v50, %v70
    %v72 = vld [vmem:[%s1 + $0x38] sm:$0xff]
    %v73 = vld [vmem:[%s1 + $0x18] sm:$0xff]
    %75 = vset.pattern.permute.xlu0 0
    %76 = vperm.xlu0 %75, %v71
    %v77 = vpop.permute.xlu0 %76
    %v79 = vmul.f32 %v77, %v73
    %v80 = vadd.f32 %v72, %v79
    %v81 = vld [vmem:[%s1 + $0x20] sm:$0xff]
    %82 = vset.pattern.permute.xlu0 1
    %83 = vperm.xlu0 %82, %v71
    %v84 = vpop.permute.xlu0 %83
    %v86 = vmul.f32 %v84, %v81
    %v87 = vadd.f32 %v80, %v86
    %v88 = vld [vmem:[%s1 + $0x28] sm:$0xff]
    %89 = vset.pattern.permute.xlu0 2
    %90 = vperm.xlu0 %89, %v71
    %v91 = vpop.permute.xlu0 %90
    %v93 = vmul.f32 %v91, %v88
    %v94 = vadd.f32 %v87, %v93
    %v95 = vld [vmem:[%s1 + $0x30] sm:$0xff]
    %96 = vset.pattern.permute.xlu0 3
    %97 = vperm.xlu0 %96, %v71
    %v98 = vpop.permute.xlu0 %97
    %v100 = vmul.f32 %v98, %v95
    %v101 = vadd.f32 %v94, %v100
    %vm102 = vcmask 39936
    %103 = vst.msk [vmem:[#allocation2] sm:$0xff] %vm102, %v101
    // Predicated region
    $region10: #{tpu_custom_call.1} parent=1 // pred_check
      _
    $region11: #{tpu_custom_call.1} parent=1 // pred_check_branch
      %105 = sbr.rel (0) target = $region13
    $region12: #{tpu_custom_call.1} parent=1 // pred_region
      %107 = vsyncadd [#allocation3], 0
      %s109 = sshll.u32 [#allocation2], 4
      %s110 = int_to_ptr.vmem [resolvable:$true] %s109
      %s111 = sshll.u32 %s2, 4
      %s112 = int_to_ptr.hbm [resolvable:$true] %s111
      %114 = dma.vmem_to_hbm [thread:$0]  %s110, 128, %s112, [#allocation3]
    $region13: #{tpu_custom_call.1} parent=1 // pred_fallthru
      _
    // Predicated region
    $region14: #{tpu_custom_call.1} parent=1 // pred_check
      _
    $region15: #{tpu_custom_call.1} parent=1 // pred_check_branch
      %116 = sbr.rel (0) target = $region17
    $region16: #{tpu_custom_call.1} parent=1 // pred_region
      %118 = dma.done [#allocation3], 128
    $region17: #{tpu_custom_call.1} parent=1 // pred_fallthru
      _
    %119 = vsyncpa [#allocation3], 1

</llo_original>
